<compile_context>
chip_gen: v7x
topology: tpu7x:2x2x1
jax: 0.10.0
libtpu: 0.0.40
codegen_flags: <defaults>
</compile_context>

<pallas_src>
import functools

import jax
import jax.numpy as jnp
from jax.experimental import pallas as pl
from jax.experimental.pallas import tpu as pltpu

HIDDEN = 256  # matches nn.Linear(input_dim, 256) in the PyTorch module


def _vae_kernel(x_ref, eps_ref,
                w1_ref, b1_ref,
                w2_ref, b2_ref,
                w3_ref, b3_ref,
                w4_ref, b4_ref,
                xhat_ref, mulogvar_ref,
                *, latent_dim):
    x = x_ref[...]                                        # (TB, input_dim)
    eps = eps_ref[...]                                    # (TB, latent_dim)

    # ---- encoder ----
    h = jnp.dot(x, w1_ref[...], preferred_element_type=jnp.float32) + b1_ref[...]
    h = jnp.maximum(h, 0.0)                               # relu
    # fused mu|logvar head: one MXU pass producing (TB, 2*latent_dim)
    mu_logvar = jnp.dot(h, w2_ref[...], preferred_element_type=jnp.float32) + b2_ref[...]
    mu = mu_logvar[:, :latent_dim]
    logvar = mu_logvar[:, latent_dim:]

    # ---- reparameterize ----  (eps supplied externally, == torch.randn_like(std))
    z = mu + eps * jnp.exp(0.5 * logvar)                  # exp -> EUP slot

    # ---- decoder ----
    h2 = jnp.dot(z, w3_ref[...], preferred_element_type=jnp.float32) + b3_ref[...]
    h2 = jnp.maximum(h2, 0.0)                             # relu
    logits = jnp.dot(h2, w4_ref[...], preferred_element_type=jnp.float32) + b4_ref[...]
    # sigmoid(x) == 0.5 * (tanh(0.5*x) + 1): tanh lives on the EUP, no VPU divide.
    x_hat = 0.5 * (jnp.tanh(0.5 * logits) + 1.0)

    xhat_ref[...] = x_hat
    mulogvar_ref[...] = mu_logvar                         # contiguous slab; split in wrapper


def vae_forward(x, eps, params, *, num_batch_tiles=None):
    """VAE forward with a single fused Pallas kernel; returns (x_hat, mu, logvar)."""
    (w1, b1, w2, b2, w3, b3, w4, b4) = params
    B, input_dim = x.shape
    latent_dim = eps.shape[1]
    hidden = w1.shape[1]

    if num_batch_tiles is None:
        # 2 parallel batch tiles keep both v7x TensorCores busy; each tile must stay
        # 8-row aligned, otherwise fall back to a single full-batch step.
        num_batch_tiles = 2 if (B % 16 == 0) else 1
    assert B % num_batch_tiles == 0
    tile_b = B // num_batch_tiles
    assert tile_b == B or tile_b % 8 == 0

    # grid-invariant parameter blocks (always block (0, 0))
    rep = lambda r, c: pl.BlockSpec((r, c), lambda i: (0, 0))
    in_specs = [
        pl.BlockSpec((tile_b, input_dim), lambda i: (i, 0)),     # x
        pl.BlockSpec((tile_b, latent_dim), lambda i: (i, 0)),    # eps
        rep(input_dim, hidden), rep(1, hidden),                  # w1, b1
        rep(hidden, 2 * latent_dim), rep(1, 2 * latent_dim),     # w2, b2 (fused mu|logvar)
        rep(latent_dim, hidden), rep(1, hidden),                 # w3, b3
        rep(hidden, input_dim), rep(1, input_dim),               # w4, b4
    ]
    out_specs = (
        pl.BlockSpec((tile_b, input_dim), lambda i: (i, 0)),       # x_hat
        pl.BlockSpec((tile_b, 2 * latent_dim), lambda i: (i, 0)),  # mu|logvar slab
    )
    out_shape = (
        jax.ShapeDtypeStruct((B, input_dim), jnp.float32),
        jax.ShapeDtypeStruct((B, 2 * latent_dim), jnp.float32),
    )

    flops = 2 * B * (input_dim * hidden + hidden * 2 * latent_dim
                     + latent_dim * hidden + hidden * input_dim)
    transcendentals = B * (latent_dim + input_dim)   # exp in reparam + tanh in sigmoid
    bytes_accessed = 4 * (int(x.size) + int(eps.size)
                          + sum(int(p.size) for p in params)
                          + B * (input_dim + 2 * latent_dim))

    kernel = functools.partial(_vae_kernel, latent_dim=latent_dim)

    x_hat, mu_logvar = pl.pallas_call(
        kernel,
        out_shape=out_shape,
        grid=(num_batch_tiles,),
        in_specs=in_specs,
        out_specs=out_specs,
        compiler_params=pltpu.CompilerParams(
            dimension_semantics=("parallel",)),
        cost_estimate=pl.CostEstimate(
            flops=flops,
            transcendentals=transcendentals,
            bytes_accessed=bytes_accessed),
    )(x, eps, w1, b1, w2, b2, w3, b3, w4, b4)

    mu = mu_logvar[:, :latent_dim]
    logvar = mu_logvar[:, latent_dim:]
    return x_hat, mu, logvar


def init_params(key, input_dim, latent_dim, hidden=HIDDEN):
    """PyTorch nn.Linear-style init (U[-1/sqrt(fan_in), 1/sqrt(fan_in)]).
    Weights stored as [in, out] (transposed vs. torch); encoder_fc2 kept fused
    as [hidden, 2*latent] exactly like the PyTorch module."""
    keys = jax.random.split(key, 8)

    def lin(kw, kb, fan_in, fan_out):
        bound = 1.0 / jnp.sqrt(fan_in)
        w = jax.random.uniform(kw, (fan_in, fan_out), jnp.float32, -bound, bound)
        b = jax.random.uniform(kb, (1, fan_out), jnp.float32, -bound, bound)
        return w, b

    w1, b1 = lin(keys[0], keys[1], input_dim, hidden)        # encoder_fc1
    w2, b2 = lin(keys[2], keys[3], hidden, 2 * latent_dim)   # encoder_fc2 (mu|logvar)
    w3, b3 = lin(keys[4], keys[5], latent_dim, hidden)       # decoder_fc1
    w4, b4 = lin(keys[6], keys[7], hidden, input_dim)        # decoder_fc2
    return (w1, b1, w2, b2, w3, b3, w4, b4)


def vae_forward_ref(x, eps, params):
    """Pure-JAX reference mirroring the PyTorch forward, for correctness checking."""
    (w1, b1, w2, b2, w3, b3, w4, b4) = params
    latent_dim = eps.shape[1]
    h = jax.nn.relu(x @ w1 + b1)
    mu_logvar = h @ w2 + b2
    mu, logvar = mu_logvar[:, :latent_dim], mu_logvar[:, latent_dim:]
    z = mu + eps * jnp.exp(0.5 * logvar)
    h2 = jax.nn.relu(z @ w3 + b3)
    x_hat = jax.nn.sigmoid(h2 @ w4 + b4)
    return x_hat, mu, logvar


if __name__ == "__main__":
    input_dim = 64
    latent_dim = 16
    batch = 64

    key = jax.random.PRNGKey(0)
    k_params, k_x, k_eps = jax.random.split(key, 3)

    params = init_params(k_params, input_dim, latent_dim)
    x = jax.random.normal(k_x, (batch, input_dim), jnp.float32)
    # torch.randn_like(std) equivalent: standard-normal noise, fixed for determinism.
    eps = jax.random.normal(k_eps, (batch, latent_dim), jnp.float32)

    x_hat, mu, logvar = jax.block_until_ready(vae_forward(x, eps, params))

    # sanity check against plain-JAX reference
    x_hat_r, mu_r, logvar_r = vae_forward_ref(x, eps, params)
    assert jnp.allclose(x_hat, x_hat_r, atol=1e-5, rtol=1e-5)
    assert jnp.allclose(mu, mu_r, atol=1e-5, rtol=1e-5)
    assert jnp.allclose(logvar, logvar_r, atol=1e-5, rtol=1e-5)

    print("KERNEL_OK")
</pallas_src>

<mosaic_0001>
module attributes {stable_mosaic.version = 11 : i64} {
  func.func @_vae_kernel(%arg0: i32, %arg1: memref<32x64xf32, #tpu.memory_space<vmem>>, %arg2: memref<32x16xf32, #tpu.memory_space<vmem>>, %arg3: memref<64x256xf32, #tpu.memory_space<vmem>>, %arg4: memref<1x256xf32, #tpu.memory_space<vmem>>, %arg5: memref<256x32xf32, #tpu.memory_space<vmem>>, %arg6: memref<1x32xf32, #tpu.memory_space<vmem>>, %arg7: memref<16x256xf32, #tpu.memory_space<vmem>>, %arg8: memref<1x256xf32, #tpu.memory_space<vmem>>, %arg9: memref<256x64xf32, #tpu.memory_space<vmem>>, %arg10: memref<1x64xf32, #tpu.memory_space<vmem>>, %arg11: memref<32x64xf32, #tpu.memory_space<vmem>>, %arg12: memref<32x32xf32, #tpu.memory_space<vmem>>) attributes {dimension_semantics = [#tpu.dimension_semantics<parallel>], iteration_bounds = array<i64: 2>, scalar_prefetch = 0 : i64, scratch_operands = 0 : i64, tpu.core_type = #tpu.core_type<tc>, window_params = [{transform_indices = @transform_0, window_bounds = array<i64: 32, 64>}, {transform_indices = @transform_1, window_bounds = array<i64: 32, 16>}, {pipeline_mode = #tpu.pipeline_mode<synchronous>, transform_indices = @transform_2, window_bounds = array<i64: 64, 256>}, {pipeline_mode = #tpu.pipeline_mode<synchronous>, transform_indices = @transform_3, window_bounds = array<i64: 1, 256>}, {pipeline_mode = #tpu.pipeline_mode<synchronous>, transform_indices = @transform_4, window_bounds = array<i64: 256, 32>}, {pipeline_mode = #tpu.pipeline_mode<synchronous>, transform_indices = @transform_5, window_bounds = array<i64: 1, 32>}, {pipeline_mode = #tpu.pipeline_mode<synchronous>, transform_indices = @transform_6, window_bounds = array<i64: 16, 256>}, {pipeline_mode = #tpu.pipeline_mode<synchronous>, transform_indices = @transform_7, window_bounds = array<i64: 1, 256>}, {pipeline_mode = #tpu.pipeline_mode<synchronous>, transform_indices = @transform_8, window_bounds = array<i64: 256, 64>}, {pipeline_mode = #tpu.pipeline_mode<synchronous>, transform_indices = @transform_9, window_bounds = array<i64: 1, 64>}, {transform_indices = @transform_10, window_bounds = array<i64: 32, 64>}, {transform_indices = @transform_11, window_bounds = array<i64: 32, 32>}]} {
    %c0 = arith.constant 0 : index
    %c0_0 = arith.constant 0 : index
    %0 = vector.load %arg1[%c0, %c0_0] : memref<32x64xf32, #tpu.memory_space<vmem>>, vector<32x64xf32>
    %c0_1 = arith.constant 0 : index
    %c0_2 = arith.constant 0 : index
    %1 = vector.load %arg2[%c0_1, %c0_2] : memref<32x16xf32, #tpu.memory_space<vmem>>, vector<32x16xf32>
    %c0_3 = arith.constant 0 : index
    %c0_4 = arith.constant 0 : index
    %2 = vector.load %arg3[%c0_3, %c0_4] : memref<64x256xf32, #tpu.memory_space<vmem>>, vector<64x256xf32>
    %cst = arith.constant dense<0.000000e+00> : vector<32x256xf32>
    %3 = tpu.matmul %0, %2, %cst {dimension_numbers = #tpu.dot_dimension_numbers<[1], [0], [0], [1], [0, 0, 1, 1], [], []>} : vector<32x64xf32>, vector<64x256xf32>, vector<32x256xf32> -> vector<32x256xf32>
    %c0_5 = arith.constant 0 : index
    %c0_6 = arith.constant 0 : index
    %4 = vector.load %arg4[%c0_5, %c0_6] : memref<1x256xf32, #tpu.memory_space<vmem>>, vector<1x256xf32>
    %5 = vector.broadcast %4 : vector<1x256xf32> to vector<32x256xf32>
    %6 = arith.addf %3, %5 : vector<32x256xf32>
    %cst_7 = arith.constant 0.000000e+00 : f32
    %7 = vector.broadcast %cst_7 : f32 to vector<32x256xf32>
    %8 = arith.maximumf %6, %7 : vector<32x256xf32>
    %c0_8 = arith.constant 0 : index
    %c0_9 = arith.constant 0 : index
    %9 = vector.load %arg5[%c0_8, %c0_9] : memref<256x32xf32, #tpu.memory_space<vmem>>, vector<256x32xf32>
    %cst_10 = arith.constant dense<0.000000e+00> : vector<32x32xf32>
    %10 = tpu.matmul %8, %9, %cst_10 {dimension_numbers = #tpu.dot_dimension_numbers<[1], [0], [0], [1], [0, 0, 1, 1], [], []>} : vector<32x256xf32>, vector<256x32xf32>, vector<32x32xf32> -> vector<32x32xf32>
    %c0_11 = arith.constant 0 : index
    %c0_12 = arith.constant 0 : index
    %11 = vector.load %arg6[%c0_11, %c0_12] : memref<1x32xf32, #tpu.memory_space<vmem>>, vector<1x32xf32>
    %12 = vector.broadcast %11 : vector<1x32xf32> to vector<32x32xf32>
    %13 = arith.addf %10, %12 : vector<32x32xf32>
    %14 = vector.extract_strided_slice %13 {offsets = [0, 0], sizes = [32, 16], strides = [1, 1]} : vector<32x32xf32> to vector<32x16xf32>
    %15 = vector.extract_strided_slice %13 {offsets = [0, 16], sizes = [32, 16], strides = [1, 1]} : vector<32x32xf32> to vector<32x16xf32>
    %cst_13 = arith.constant 5.000000e-01 : f32
    %16 = vector.broadcast %cst_13 : f32 to vector<32x16xf32>
    %17 = arith.mulf %16, %15 : vector<32x16xf32>
    %18 = math.exp %17 : vector<32x16xf32>
    %19 = arith.mulf %1, %18 : vector<32x16xf32>
    %20 = arith.addf %14, %19 : vector<32x16xf32>
    %c0_14 = arith.constant 0 : index
    %c0_15 = arith.constant 0 : index
    %21 = vector.load %arg7[%c0_14, %c0_15] : memref<16x256xf32, #tpu.memory_space<vmem>>, vector<16x256xf32>
    %cst_16 = arith.constant dense<0.000000e+00> : vector<32x256xf32>
    %22 = tpu.matmul %20, %21, %cst_16 {dimension_numbers = #tpu.dot_dimension_numbers<[1], [0], [0], [1], [0, 0, 1, 1], [], []>} : vector<32x16xf32>, vector<16x256xf32>, vector<32x256xf32> -> vector<32x256xf32>
    %c0_17 = arith.constant 0 : index
    %c0_18 = arith.constant 0 : index
    %23 = vector.load %arg8[%c0_17, %c0_18] : memref<1x256xf32, #tpu.memory_space<vmem>>, vector<1x256xf32>
    %24 = vector.broadcast %23 : vector<1x256xf32> to vector<32x256xf32>
    %25 = arith.addf %22, %24 : vector<32x256xf32>
    %cst_19 = arith.constant 0.000000e+00 : f32
    %26 = vector.broadcast %cst_19 : f32 to vector<32x256xf32>
    %27 = arith.maximumf %25, %26 : vector<32x256xf32>
    %c0_20 = arith.constant 0 : index
    %c0_21 = arith.constant 0 : index
    %28 = vector.load %arg9[%c0_20, %c0_21] : memref<256x64xf32, #tpu.memory_space<vmem>>, vector<256x64xf32>
    %cst_22 = arith.constant dense<0.000000e+00> : vector<32x64xf32>
    %29 = tpu.matmul %27, %28, %cst_22 {dimension_numbers = #tpu.dot_dimension_numbers<[1], [0], [0], [1], [0, 0, 1, 1], [], []>} : vector<32x256xf32>, vector<256x64xf32>, vector<32x64xf32> -> vector<32x64xf32>
    %c0_23 = arith.constant 0 : index
    %c0_24 = arith.constant 0 : index
    %30 = vector.load %arg10[%c0_23, %c0_24] : memref<1x64xf32, #tpu.memory_space<vmem>>, vector<1x64xf32>
    %31 = vector.broadcast %30 : vector<1x64xf32> to vector<32x64xf32>
    %32 = arith.addf %29, %31 : vector<32x64xf32>
    %cst_25 = arith.constant 5.000000e-01 : f32
    %33 = vector.broadcast %cst_25 : f32 to vector<32x64xf32>
    %34 = arith.mulf %33, %32 : vector<32x64xf32>
    %35 = math.tanh %34 : vector<32x64xf32>
    %cst_26 = arith.constant 1.000000e+00 : f32
    %36 = vector.broadcast %cst_26 : f32 to vector<32x64xf32>
    %37 = arith.addf %35, %36 : vector<32x64xf32>
    %cst_27 = arith.constant 5.000000e-01 : f32
    %38 = vector.broadcast %cst_27 : f32 to vector<32x64xf32>
    %39 = arith.mulf %38, %37 : vector<32x64xf32>
    %c0_28 = arith.constant 0 : index
    %c0_29 = arith.constant 0 : index
    %40 = vector.load %arg11[%c0_28, %c0_29] : memref<32x64xf32, #tpu.memory_space<vmem>>, vector<32x64xf32>
    tpu.vector_store %arg11[%c0_28, %c0_29], %39 {strides = array<i32>} : memref<32x64xf32, #tpu.memory_space<vmem>>, vector<32x64xf32>,
    %c0_30 = arith.constant 0 : index
    %c0_31 = arith.constant 0 : index
    %41 = vector.load %arg12[%c0_30, %c0_31] : memref<32x32xf32, #tpu.memory_space<vmem>>, vector<32x32xf32>
    tpu.vector_store %arg12[%c0_30, %c0_31], %13 {strides = array<i32>} : memref<32x32xf32, #tpu.memory_space<vmem>>, vector<32x32xf32>,
    return
  }
  func.func @transform_0(%arg0: i32) -> (i32, i32) {
    %c0_i32 = arith.constant 0 : i32
    %c0_i32_0 = arith.constant 0 : i32
    return %arg0, %c0_i32 : i32, i32
  }
  func.func @transform_1(%arg0: i32) -> (i32, i32) {
    %c0_i32 = arith.constant 0 : i32
    %c0_i32_0 = arith.constant 0 : i32
    return %arg0, %c0_i32 : i32, i32
  }
  func.func @transform_2(%arg0: i32) -> (i32, i32) {
    %c0_i32 = arith.constant 0 : i32
    %c0_i32_0 = arith.constant 0 : i32
    %c0_i32_1 = arith.constant 0 : i32
    return %c0_i32, %c0_i32_0 : i32, i32
  }
  func.func @transform_3(%arg0: i32) -> (i32, i32) {
    %c0_i32 = arith.constant 0 : i32
    %c0_i32_0 = arith.constant 0 : i32
    %c0_i32_1 = arith.constant 0 : i32
    return %c0_i32, %c0_i32_0 : i32, i32
  }
  func.func @transform_4(%arg0: i32) -> (i32, i32) {
    %c0_i32 = arith.constant 0 : i32
    %c0_i32_0 = arith.constant 0 : i32
    %c0_i32_1 = arith.constant 0 : i32
    return %c0_i32, %c0_i32_0 : i32, i32
  }
  func.func @transform_5(%arg0: i32) -> (i32, i32) {
    %c0_i32 = arith.constant 0 : i32
    %c0_i32_0 = arith.constant 0 : i32
    %c0_i32_1 = arith.constant 0 : i32
    return %c0_i32, %c0_i32_0 : i32, i32
  }
  func.func @transform_6(%arg0: i32) -> (i32, i32) {
    %c0_i32 = arith.constant 0 : i32
    %c0_i32_0 = arith.constant 0 : i32
    %c0_i32_1 = arith.constant 0 : i32
    return %c0_i32, %c0_i32_0 : i32, i32
  }
  func.func @transform_7(%arg0: i32) -> (i32, i32) {
    %c0_i32 = arith.constant 0 : i32
    %c0_i32_0 = arith.constant 0 : i32
    %c0_i32_1 = arith.constant 0 : i32
    return %c0_i32, %c0_i32_0 : i32, i32
  }
  func.func @transform_8(%arg0: i32) -> (i32, i32) {
    %c0_i32 = arith.constant 0 : i32
    %c0_i32_0 = arith.constant 0 : i32
    %c0_i32_1 = arith.constant 0 : i32
    return %c0_i32, %c0_i32_0 : i32, i32
  }
  func.func @transform_9(%arg0: i32) -> (i32, i32) {
    %c0_i32 = arith.constant 0 : i32
    %c0_i32_0 = arith.constant 0 : i32
    %c0_i32_1 = arith.constant 0 : i32
    return %c0_i32, %c0_i32_0 : i32, i32
  }
  func.func @transform_10(%arg0: i32) -> (i32, i32) {
    %c0_i32 = arith.constant 0 : i32
    %c0_i32_0 = arith.constant 0 : i32
    return %arg0, %c0_i32 : i32, i32
  }
  func.func @transform_11(%arg0: i32) -> (i32, i32) {
    %c0_i32 = arith.constant 0 : i32
    %c0_i32_0 = arith.constant 0 : i32
    return %arg0, %c0_i32 : i32, i32
  }
}

</mosaic_0001>

<llo_original>
// kernel: tpu_custom_call.1
$region0: #{tpu_custom_call.1}
  #allocation0 [shape = 'u32[]', space=smem, size = 0x4, offset = 0x4, fixed_abs, tag = 'smem constant byte address 0x4 - core index']
  #allocation1 [shape = 'u32[144,128]{1,0:T(1,128)}', space=vmem, size = 0x12000, scoped, tag = 'internal scratch']
  %s0 = inlined_call_operand.vmem [shape: f32[64,64], index: 0, kind: input, shape index: {}]
  %s1 = inlined_call_operand.vmem [shape: f32[64,16], index: 1, kind: input, shape index: {}]
  %s2 = inlined_call_operand.vmem [shape: f32[64,256], index: 2, kind: input, shape index: {}]
  %s3 = inlined_call_operand.vmem [shape: f32[1,256], index: 3, kind: input, shape index: {}]
  %s4 = inlined_call_operand.vmem [shape: f32[256,32], index: 4, kind: input, shape index: {}]
  %s5 = inlined_call_operand.vmem [shape: f32[1,32], index: 5, kind: input, shape index: {}]
  %s6 = inlined_call_operand.vmem [shape: f32[16,256], index: 6, kind: input, shape index: {}]
  %s7 = inlined_call_operand.vmem [shape: f32[1,256], index: 7, kind: input, shape index: {}]
  %s8 = inlined_call_operand.vmem [shape: f32[256,64], index: 8, kind: input, shape index: {}]
  %s9 = inlined_call_operand.vmem [shape: f32[1,64], index: 9, kind: input, shape index: {}]
  %s10 = inlined_call_operand.hbm [shape: f32[64,64], index: 10, kind: output, shape index: {0}]
  %s11 = inlined_call_operand.vmem [shape: f32[64,32], index: 11, kind: output, shape index: {1}]
  %12 = xla_tuple %s10, %s11
  %s13 = sld [smem:[#allocation0]]
  $region81: #{tpu_custom_call.1} parent=0
    _
  %s15 = ssub.s32 1, %s13
  %s16 = scalar_select 0, %s15, %s13
  $region1: #{tpu_custom_call.1} parent=0
    #allocation2 [shape = 'u8[32768]{0}', space=vmem, size = 0x8000, scoped, tag = 'output window, operand 0']
    #allocation3 [shape = 's32[2]{0}', space=sflag, size = 0x8, scoped, tag = 'scoped memory for tpu_custom_call.1']
    %17 = vsyncpa [#allocation3], 0
    %s18 = scalar_lea.sflag [#allocation3], 1
    %19 = vsyncpa %s18, 0
    loop: start=0, step=1, limit=4
    $region2: #{tpu_custom_call.1} parent=1 // loop_pre_header
      _
    $region3: #{tpu_custom_call.1} parent=1 // loop_header
      %s21 = sphi 0, %s25
      %p22 = scmp.ge.s32.totalorder %s21, 4
      %s31 = sphi 0, %s33
      %s34 = sphi 0, %s31
      %s35 = sphi 0, %s34
      %s51 = sphi 0, %s35
      %s57 = sphi 0, %s59
      %s60 = sphi 0, %s57
      %s61 = sphi 0, %s60
      %s77 = sphi 0, %s61
      %s81 = sphi 0, %s81
      %s83 = sphi 0, %s81
      %s84 = sphi 0, %s83
      %s98 = sphi 0, %s84
      %s102 = sphi 0, %s102
      %s104 = sphi 0, %s102
      %s105 = sphi 0, %s104
      %s119 = sphi 0, %s105
      %s123 = sphi 0, %s123
      %s125 = sphi 0, %s123
      %s126 = sphi 0, %s125
      %s140 = sphi 0, %s126
      %s144 = sphi 0, %s144
      %s146 = sphi 0, %s144
      %s147 = sphi 0, %s146
      %s161 = sphi 0, %s147
      %s165 = sphi 0, %s165
      %s167 = sphi 0, %s165
      %s168 = sphi 0, %s167
      %s182 = sphi 0, %s168
      %s186 = sphi 0, %s186
      %s188 = sphi 0, %s186
      %s189 = sphi 0, %s188
      %s203 = sphi 0, %s189
      %s207 = sphi 0, %s207
      %s209 = sphi 0, %s207
      %s210 = sphi 0, %s209
      %s224 = sphi 0, %s210
      %s228 = sphi 0, %s228
      %s230 = sphi 0, %s228
      %s231 = sphi 0, %s230
      %s245 = sphi 0, %s231
      %s251 = sphi 0, %s253
      %s254 = sphi 0, %s251
      %s255 = sphi 0, %s254
      %s271 = sphi 0, %s255
      %s277 = sphi 0, %s279
      %s280 = sphi 0, %s277
      %s281 = sphi 0, %s280
      %s297 = sphi 0, %s281
    $region4: #{tpu_custom_call.1} parent=1 // loop_header_branch
      %24 = sbr.rel (%p22) target = $region8
    $region5: #{tpu_custom_call.1} parent=1 // loop_body
      %s26 = ssub.s32 %s21, 1
      %s27 = ssub.s32 %s21, 2
      %s28 = sadd.s32 %s21, 1
      %s29 = ssub.s32 %s21, %s28
      %p30 = scmp.eq.s32.totalorder %s29, 0
      %s32 = sadd.s32 %s31, 1
      %s33 = scalar_select %p30, %s31, %s32
      %p36 = pneg %p30
      %p37 = scmp.eq.s32.totalorder %s21, 1
      %p38 = por %p36, %p37
      %p39 = scmp.ne.s32.totalorder %s31, %s34
      %p40 = scmp.eq.s32.totalorder %s21, 0
      %p41 = por %p39, %p40
      %p42 = scmp.ne.s32.totalorder %s31, %s34
      %p43 = scmp.eq.s32.totalorder %s26, 1
      %p44 = por %p42, %p43
      %p45 = scmp.ne.s32.totalorder %s34, %s35
      %p46 = scmp.eq.s32.totalorder %s26, 0
      %p47 = por %p45, %p46
      %p48 = scmp.ne.s32.totalorder %s34, %s35
      %p49 = scmp.eq.s32.totalorder %s27, 1
      %p50 = por %p48, %p49
      %p52 = scmp.ne.s32.totalorder %s35, %s51
      %p53 = scmp.eq.s32.totalorder %s27, 0
      %p54 = por %p52, %p53
      %s55 = ssub.s32 %s21, %s28
      %p56 = scmp.eq.s32.totalorder %s55, 0
      %s58 = sadd.s32 %s57, 1
      %s59 = scalar_select %p56, %s57, %s58
      %p62 = pneg %p56
      %p63 = scmp.eq.s32.totalorder %s21, 1
      %p64 = por %p62, %p63
      %p65 = scmp.ne.s32.totalorder %s57, %s60
      %p66 = scmp.eq.s32.totalorder %s21, 0
      %p67 = por %p65, %p66
      %p68 = scmp.ne.s32.totalorder %s57, %s60
      %p69 = scmp.eq.s32.totalorder %s26, 1
      %p70 = por %p68, %p69
      %p71 = scmp.ne.s32.totalorder %s60, %s61
      %p72 = scmp.eq.s32.totalorder %s26, 0
      %p73 = por %p71, %p72
      %p74 = scmp.ne.s32.totalorder %s60, %s61
      %p75 = scmp.eq.s32.totalorder %s27, 1
      %p76 = por %p74, %p75
      %p78 = scmp.ne.s32.totalorder %s61, %s77
      %p79 = scmp.eq.s32.totalorder %s27, 0
      %p80 = por %p78, %p79
      %s82 = sadd.s32 %s81, 1
      %p85 = scmp.eq.s32.totalorder %s21, 1
      %p86 = scmp.ne.s32.totalorder %s81, %s83
      %p87 = scmp.eq.s32.totalorder %s21, 0
      %p88 = por %p86, %p87
      %p89 = scmp.ne.s32.totalorder %s81, %s83
      %p90 = scmp.eq.s32.totalorder %s26, 1
      %p91 = por %p89, %p90
      %p92 = scmp.ne.s32.totalorder %s83, %s84
      %p93 = scmp.eq.s32.totalorder %s26, 0
      %p94 = por %p92, %p93
      %p95 = scmp.ne.s32.totalorder %s83, %s84
      %p96 = scmp.eq.s32.totalorder %s27, 1
      %p97 = por %p95, %p96
      %p99 = scmp.ne.s32.totalorder %s84, %s98
      %p100 = scmp.eq.s32.totalorder %s27, 0
      %p101 = por %p99, %p100
      %s103 = sadd.s32 %s102, 1
      %p106 = scmp.eq.s32.totalorder %s21, 1
      %p107 = scmp.ne.s32.totalorder %s102, %s104
      %p108 = scmp.eq.s32.totalorder %s21, 0
      %p109 = por %p107, %p108
      %p110 = scmp.ne.s32.totalorder %s102, %s104
      %p111 = scmp.eq.s32.totalorder %s26, 1
      %p112 = por %p110, %p111
      %p113 = scmp.ne.s32.totalorder %s104, %s105
      %p114 = scmp.eq.s32.totalorder %s26, 0
      %p115 = por %p113, %p114
      %p116 = scmp.ne.s32.totalorder %s104, %s105
      %p117 = scmp.eq.s32.totalorder %s27, 1
      %p118 = por %p116, %p117
      %p120 = scmp.ne.s32.totalorder %s105, %s119
      %p121 = scmp.eq.s32.totalorder %s27, 0
      %p122 = por %p120, %p121
      %s124 = sadd.s32 %s123, 1
      %p127 = scmp.eq.s32.totalorder %s21, 1
      %p128 = scmp.ne.s32.totalorder %s123, %s125
      %p129 = scmp.eq.s32.totalorder %s21, 0
      %p130 = por %p128, %p129
      %p131 = scmp.ne.s32.totalorder %s123, %s125
      %p132 = scmp.eq.s32.totalorder %s26, 1
      %p133 = por %p131, %p132
      %p134 = scmp.ne.s32.totalorder %s125, %s126
      %p135 = scmp.eq.s32.totalorder %s26, 0
      %p136 = por %p134, %p135
      %p137 = scmp.ne.s32.totalorder %s125, %s126
      %p138 = scmp.eq.s32.totalorder %s27, 1
      %p139 = por %p137, %p138
      %p141 = scmp.ne.s32.totalorder %s126, %s140
      %p142 = scmp.eq.s32.totalorder %s27, 0
      %p143 = por %p141, %p142
      %s145 = sadd.s32 %s144, 1
      %p148 = scmp.eq.s32.totalorder %s21, 1
      %p149 = scmp.ne.s32.totalorder %s144, %s146
      %p150 = scmp.eq.s32.totalorder %s21, 0
      %p151 = por %p149, %p150
      %p152 = scmp.ne.s32.totalorder %s144, %s146
      %p153 = scmp.eq.s32.totalorder %s26, 1
      %p154 = por %p152, %p153
      %p155 = scmp.ne.s32.totalorder %s146, %s147
      %p156 = scmp.eq.s32.totalorder %s26, 0
      %p157 = por %p155, %p156
      %p158 = scmp.ne.s32.totalorder %s146, %s147
      %p159 = scmp.eq.s32.totalorder %s27, 1
      %p160 = por %p158, %p159
      %p162 = scmp.ne.s32.totalorder %s147, %s161
      %p163 = scmp.eq.s32.totalorder %s27, 0
      %p164 = por %p162, %p163
      %s166 = sadd.s32 %s165, 1
      %p169 = scmp.eq.s32.totalorder %s21, 1
      %p170 = scmp.ne.s32.totalorder %s165, %s167
      %p171 = scmp.eq.s32.totalorder %s21, 0
      %p172 = por %p170, %p171
      %p173 = scmp.ne.s32.totalorder %s165, %s167
      %p174 = scmp.eq.s32.totalorder %s26, 1
      %p175 = por %p173, %p174
      %p176 = scmp.ne.s32.totalorder %s167, %s168
      %p177 = scmp.eq.s32.totalorder %s26, 0
      %p178 = por %p176, %p177
      %p179 = scmp.ne.s32.totalorder %s167, %s168
      %p180 = scmp.eq.s32.totalorder %s27, 1
      %p181 = por %p179, %p180
      %p183 = scmp.ne.s32.totalorder %s168, %s182
      %p184 = scmp.eq.s32.totalorder %s27, 0
      %p185 = por %p183, %p184
      %s187 = sadd.s32 %s186, 1
      %p190 = scmp.eq.s32.totalorder %s21, 1
      %p191 = scmp.ne.s32.totalorder %s186, %s188
      %p192 = scmp.eq.s32.totalorder %s21, 0
      %p193 = por %p191, %p192
      %p194 = scmp.ne.s32.totalorder %s186, %s188
      %p195 = scmp.eq.s32.totalorder %s26, 1
      %p196 = por %p194, %p195
      %p197 = scmp.ne.s32.totalorder %s188, %s189
      %p198 = scmp.eq.s32.totalorder %s26, 0
      %p199 = por %p197, %p198
      %p200 = scmp.ne.s32.totalorder %s188, %s189
      %p201 = scmp.eq.s32.totalorder %s27, 1
      %p202 = por %p200, %p201
      %p204 = scmp.ne.s32.totalorder %s189, %s203
      %p205 = scmp.eq.s32.totalorder %s27, 0
      %p206 = por %p204, %p205
      %s208 = sadd.s32 %s207, 1
      %p211 = scmp.eq.s32.totalorder %s21, 1
      %p212 = scmp.ne.s32.totalorder %s207, %s209
      %p213 = scmp.eq.s32.totalorder %s21, 0
      %p214 = por %p212, %p213
      %p215 = scmp.ne.s32.totalorder %s207, %s209
      %p216 = scmp.eq.s32.totalorder %s26, 1
      %p217 = por %p215, %p216
      %p218 = scmp.ne.s32.totalorder %s209, %s210
      %p219 = scmp.eq.s32.totalorder %s26, 0
      %p220 = por %p218, %p219
      %p221 = scmp.ne.s32.totalorder %s209, %s210
      %p222 = scmp.eq.s32.totalorder %s27, 1
      %p223 = por %p221, %p222
      %p225 = scmp.ne.s32.totalorder %s210, %s224
      %p226 = scmp.eq.s32.totalorder %s27, 0
      %p227 = por %p225, %p226
      %s229 = sadd.s32 %s228, 1
      %p232 = scmp.eq.s32.totalorder %s21, 1
      %p233 = scmp.ne.s32.totalorder %s228, %s230
      %p234 = scmp.eq.s32.totalorder %s21, 0
      %p235 = por %p233, %p234
      %p236 = scmp.ne.s32.totalorder %s228, %s230
      %p237 = scmp.eq.s32.totalorder %s26, 1
      %p238 = por %p236, %p237
      %p239 = scmp.ne.s32.totalorder %s230, %s231
      %p240 = scmp.eq.s32.totalorder %s26, 0
      %p241 = por %p239, %p240
      %p242 = scmp.ne.s32.totalorder %s230, %s231
      %p243 = scmp.eq.s32.totalorder %s27, 1
      %p244 = por %p242, %p243
      %p246 = scmp.ne.s32.totalorder %s231, %s245
      %p247 = scmp.eq.s32.totalorder %s27, 0
      %p248 = por %p246, %p247
      %s249 = ssub.s32 %s21, %s28
      %p250 = scmp.eq.s32.totalorder %s249, 0
      %s252 = sadd.s32 %s251, 1
      %s253 = scalar_select %p250, %s251, %s252
      %p256 = pneg %p250
      %p257 = scmp.eq.s32.totalorder %s21, 1
      %p258 = por %p256, %p257
      %p259 = scmp.ne.s32.totalorder %s251, %s254
      %p260 = scmp.eq.s32.totalorder %s21, 0
      %p261 = por %p259, %p260
      %p262 = scmp.ne.s32.totalorder %s251, %s254
      %p263 = scmp.eq.s32.totalorder %s26, 1
      %p264 = por %p262, %p263
      %p265 = scmp.ne.s32.totalorder %s254, %s255
      %p266 = scmp.eq.s32.totalorder %s26, 0
      %p267 = por %p265, %p266
      %p268 = scmp.ne.s32.totalorder %s254, %s255
      %p269 = scmp.eq.s32.totalorder %s27, 1
      %p270 = por %p268, %p269
      %p272 = scmp.ne.s32.totalorder %s255, %s271
      %p273 = scmp.eq.s32.totalorder %s27, 0
      %p274 = por %p272, %p273
      %s275 = ssub.s32 %s21, %s28
      %p276 = scmp.eq.s32.totalorder %s275, 0
      %s278 = sadd.s32 %s277, 1
      %s279 = scalar_select %p276, %s277, %s278
      %p282 = pneg %p276
      %p283 = scmp.eq.s32.totalorder %s21, 1
      %p284 = por %p282, %p283
      %p285 = scmp.ne.s32.totalorder %s277, %s280
      %p286 = scmp.eq.s32.totalorder %s21, 0
      %p287 = por %p285, %p286
      %p288 = scmp.ne.s32.totalorder %s277, %s280
      %p289 = scmp.eq.s32.totalorder %s26, 1
      %p290 = por %p288, %p289
      %p291 = scmp.ne.s32.totalorder %s280, %s281
      %p292 = scmp.eq.s32.totalorder %s26, 0
      %p293 = por %p291, %p292
      %p294 = scmp.ne.s32.totalorder %s280, %s281
      %p295 = scmp.eq.s32.totalorder %s27, 1
      %p296 = por %p294, %p295
      %p298 = scmp.ne.s32.totalorder %s281, %s297
      %p299 = scmp.eq.s32.totalorder %s27, 0
      %p300 = por %p298, %p299
      %p301 = scmp.le.s32.totalorder 1, %s21
      %p302 = scmp.lt.s32.totalorder %s21, 3
      %p303 = pnand %p301, %p302
      %p304 = pneg %p303
      // Predicated region
      $region9: #{tpu_custom_call.1} parent=5 // pred_check
        _
      $region10: #{tpu_custom_call.1} parent=5 // pred_check_branch
        %306 = sbr.rel (%p303) target = $region12
      $region11: #{tpu_custom_call.1} parent=5 // pred_region
        %s307 = ssub.s32 %s21, 1
        // Predicated region
        $region13: #{tpu_custom_call.1} parent=11 // pred_check
          %p308 = pneg %p94
        $region14: #{tpu_custom_call.1} parent=11 // pred_check_branch
          %310 = sbr.rel (%p308) target = $region16
        $region15: #{tpu_custom_call.1} parent=11 // pred_region
          _
        $region16: #{tpu_custom_call.1} parent=11 // pred_fallthru
          _
        // Predicated region
        $region17: #{tpu_custom_call.1} parent=11 // pred_check
          %p311 = pneg %p115
        $region18: #{tpu_custom_call.1} parent=11 // pred_check_branch
          %313 = sbr.rel (%p311) target = $region20
        $region19: #{tpu_custom_call.1} parent=11 // pred_region
          _
        $region20: #{tpu_custom_call.1} parent=11 // pred_fallthru
          _
        // Predicated region
        $region21: #{tpu_custom_call.1} parent=11 // pred_check
          %p314 = pneg %p136
        $region22: #{tpu_custom_call.1} parent=11 // pred_check_branch
          %316 = sbr.rel (%p314) target = $region24
        $region23: #{tpu_custom_call.1} parent=11 // pred_region
          _
        $region24: #{tpu_custom_call.1} parent=11 // pred_fallthru
          _
        // Predicated region
        $region25: #{tpu_custom_call.1} parent=11 // pred_check
          %p317 = pneg %p157
        $region26: #{tpu_custom_call.1} parent=11 // pred_check_branch
          %319 = sbr.rel (%p317) target = $region28
        $region27: #{tpu_custom_call.1} parent=11 // pred_region
          _
        $region28: #{tpu_custom_call.1} parent=11 // pred_fallthru
          _
        // Predicated region
        $region29: #{tpu_custom_call.1} parent=11 // pred_check
          %p320 = pneg %p178
        $region30: #{tpu_custom_call.1} parent=11 // pred_check_branch
          %322 = sbr.rel (%p320) target = $region32
        $region31: #{tpu_custom_call.1} parent=11 // pred_region
          _
        $region32: #{tpu_custom_call.1} parent=11 // pred_fallthru
          _
        // Predicated region
        $region33: #{tpu_custom_call.1} parent=11 // pred_check
          %p323 = pneg %p199
        $region34: #{tpu_custom_call.1} parent=11 // pred_check_branch
          %325 = sbr.rel (%p323) target = $region36
        $region35: #{tpu_custom_call.1} parent=11 // pred_region
          _
        $region36: #{tpu_custom_call.1} parent=11 // pred_fallthru
          _
        // Predicated region
        $region37: #{tpu_custom_call.1} parent=11 // pred_check
          %p326 = pneg %p220
        $region38: #{tpu_custom_call.1} parent=11 // pred_check_branch
          %328 = sbr.rel (%p326) target = $region40
        $region39: #{tpu_custom_call.1} parent=11 // pred_region
          _
        $region40: #{tpu_custom_call.1} parent=11 // pred_fallthru
          _
        // Predicated region
        $region41: #{tpu_custom_call.1} parent=11 // pred_check
          %p329 = pneg %p241
        $region42: #{tpu_custom_call.1} parent=11 // pred_check_branch
          %331 = sbr.rel (%p329) target = $region44
        $region43: #{tpu_custom_call.1} parent=11 // pred_region
          _
        $region44: #{tpu_custom_call.1} parent=11 // pred_fallthru
          _
      $region12: #{tpu_custom_call.1} parent=5 // pred_fallthru
        _
      %p332 = scmp.lt.s32.totalorder %s21, 2
      // Predicated region
      $region45: #{tpu_custom_call.1} parent=5 // pred_check
        %p333 = pneg %p332
      $region46: #{tpu_custom_call.1} parent=5 // pred_check_branch
        %335 = sbr.rel (%p333) target = $region48
      $region47: #{tpu_custom_call.1} parent=5 // pred_region
        // Predicated region
        $region49: #{tpu_custom_call.1} parent=47 // pred_check
          %p336 = pneg %p41
        $region50: #{tpu_custom_call.1} parent=47 // pred_check_branch
          %338 = sbr.rel (%p336) target = $region52
        $region51: #{tpu_custom_call.1} parent=47 // pred_region
          %s339 = smul.u32 4, %s21
          %p340 = scmp.lt.s32.totalorder %s339, 7
          %s341 = scalar_select %p340, %s339, 7
          %s342 = smul.addr %s341, 8
          %s343 = scalar_lea.vmem %s0, %s342
          %s344 = smul.u32 4, %s21
        $region52: #{tpu_custom_call.1} parent=47 // pred_fallthru
          _
        // Predicated region
        $region53: #{tpu_custom_call.1} parent=47 // pred_check
          %p345 = pneg %p67
        $region54: #{tpu_custom_call.1} parent=47 // pred_check_branch
          %347 = sbr.rel (%p345) target = $region56
        $region55: #{tpu_custom_call.1} parent=47 // pred_region
          %s348 = smul.u32 4, %s21
          %p349 = scmp.lt.s32.totalorder %s348, 7
          %s350 = scalar_select %p349, %s348, 7
          %s351 = smul.addr %s350, 8
          %s352 = scalar_lea.vmem %s1, %s351
          %s353 = smul.u32 4, %s21
        $region56: #{tpu_custom_call.1} parent=47 // pred_fallthru
          _
      $region48: #{tpu_custom_call.1} parent=5 // pred_fallthru
        _
      %p354 = scmp.le.s32.totalorder 1, %s21
      %p355 = scmp.lt.s32.totalorder %s21, 3
      %p356 = pnand %p354, %p355
      %p357 = pneg %p356
      // Predicated region
      $region57: #{tpu_custom_call.1} parent=5 // pred_check
        _
      $region58: #{tpu_custom_call.1} parent=5 // pred_check_branch
        %359 = sbr.rel (%p356) target = $region60
      $region59: #{tpu_custom_call.1} parent=5 // pred_region
        %s360 = ssub.s32 %s21, 1
        %s361 = smul.u32 4, %s26
        %p362 = scmp.lt.s32.totalorder %s361, 7
        %s363 = scalar_select %p362, %s361, 7
        %s364 = smul.addr %s363, 8
        %s365 = scalar_lea.vmem %s0, %s364
        %p366 = pneg %p47
        %p367 = pneg %p44
        %s368 = smul.u32 4, %s26
        %p369 = scmp.lt.s32.totalorder %s368, 7
        %s370 = scalar_select %p369, %s368, 7
        %s371 = smul.addr %s370, 8
        %s372 = scalar_lea.vmem %s1, %s371
        %p373 = pneg %p73
        %p374 = pneg %p70
        %p375 = pneg %p94
        %p376 = pneg %p91
        %p377 = pneg %p115
        %p378 = pneg %p112
        %p379 = pneg %p136
        %p380 = pneg %p133
        %p381 = pneg %p157
        %p382 = pneg %p154
        %p383 = pneg %p178
        %p384 = pneg %p175
        %p385 = pneg %p199
        %p386 = pneg %p196
        %p387 = pneg %p220
        %p388 = pneg %p217
        %p389 = pneg %p241
        %p390 = pneg %p238
        %p391 = pneg %p267
        %p392 = pneg %p264
        %s393 = sand.u32 %s254, 1
        %s394 = scalar_lea.sflag [#allocation3], %s393
        %s395 = sand.u32 %s254, 1
        %s396 = smul.addr %s395, 32
        %s397 = scalar_lea.vmem [#allocation2], %s396
        %p398 = pneg %p293
        %p399 = pneg %p290
        %s400 = smul.u32 4, %s26
        %p401 = scmp.lt.s32.totalorder %s400, 7
        %s402 = scalar_select %p401, %s400, 7
        %s403 = smul.addr %s402, 8
        %s404 = scalar_lea.vmem %s11, %s403
        %s405 = smul.u32 4, %s26
        %p406 = scmp.lt.s32.totalorder %s405, 7
        %s407 = scalar_select %p406, %s405, 7
        %s408 = smul.addr %s407, 8
        %s409 = scalar_lea.vmem %s0, %s408
        %s410 = smul.u32 4, %s26
        %s411 = smul.u32 4, %s26
        %p412 = scmp.lt.s32.totalorder %s411, 7
        %s413 = scalar_select %p412, %s411, 7
        %s414 = smul.addr %s413, 8
        %s415 = scalar_lea.vmem %s1, %s414
        %s416 = smul.u32 4, %s26
        %s417 = smul.u32 4, %s26
        %s418 = smul.u32 4, %s26
        %p419 = scmp.lt.s32.totalorder %s418, 7
        %s420 = scalar_select %p419, %s418, 7
        %s421 = smul.addr %s420, 8
        %s422 = scalar_lea.vmem %s11, %s421
        %s423 = smul.u32 4, %s26
        %v424 = vld [vmem:[%s409] sm:$0xff]
        %v425 = vld [vmem:[%s409 + $0x8] sm:$0xff]
        %v426 = vld [vmem:[%s409 + $0x10] sm:$0xff]
        %v427 = vld [vmem:[%s409 + $0x18] sm:$0xff]
        %v428 = vld [vmem:[%s415] sm:$0xff]
        %v429 = vld [vmem:[%s415 + $0x8] sm:$0xff]
        %v430 = vld [vmem:[%s415 + $0x10] sm:$0xff]
        %v431 = vld [vmem:[%s415 + $0x18] sm:$0xff]
        %v432 = vld [vmem:[%s2] sm:$0xff]
        %v433 = vld [vmem:[%s2 + $0x8] sm:$0xff]
        %v434 = vld [vmem:[%s2 + $0x10] sm:$0xff]
        %v435 = vld [vmem:[%s2 + $0x18] sm:$0xff]
        %v436 = vld [vmem:[%s2 + $0x20] sm:$0xff]
        %v437 = vld [vmem:[%s2 + $0x28] sm:$0xff]
        %v438 = vld [vmem:[%s2 + $0x30] sm:$0xff]
        %v439 = vld [vmem:[%s2 + $0x38] sm:$0xff]
        %v440 = vld [vmem:[%s2 + $0x40] sm:$0xff]
        %v441 = vld [vmem:[%s2 + $0x48] sm:$0xff]
        %v442 = vld [vmem:[%s2 + $0x50] sm:$0xff]
        %v443 = vld [vmem:[%s2 + $0x58] sm:$0xff]
        %v444 = vld [vmem:[%s2 + $0x60] sm:$0xff]
        %v445 = vld [vmem:[%s2 + $0x68] sm:$0xff]
        %v446 = vld [vmem:[%s2 + $0x70] sm:$0xff]
        %v447 = vld [vmem:[%s2 + $0x78] sm:$0xff]
        %v448 = vld [vmem:[%s3] sm:$0x3]
        %v450 = vlaneseq
        %v451 = vshrl.u32 %v450, 7
        %v452 = vsub.s32 0, %v451
        %v453 = vrot.slane %v448, %v452
        %v454 = vlaneseq
        %v455 = vshrl.u32 %v454, 7
        %v456 = vsub.s32 1, %v455
        %v457 = vrot.slane %v448, %v456
        %vm460 = vcmask 523264
        %v462 = vsel %vm460, %v424, 0
        %v465 = vsel %vm460, %v425, 0
        %v468 = vsel %vm460, %v426, 0
        %v471 = vsel %vm460, %v427, 0
        %473 = vmatprep.subr.mxu0 %v433
        %474 = vmatpush1.msra.mxu0 %v432
        %475 = vmatprep.subr.mxu0 %v435
        %476 = vmatpush1.msra.mxu0 %v434
        %477 = vmatprep.subr.mxu0 %v437
        %478 = vmatpush1.msra.mxu0 %v436
        %479 = vmatprep.subr.mxu0 %v439
        %480 = vmatpush1.msra.mxu0 %v438
        %481 = vmatprep.subr.mxu0 %v441
        %482 = vmatpush1.msra.mxu0 %v440
        %483 = vmatprep.subr.mxu0 %v443
        %484 = vmatpush1.msra.mxu0 %v442
        %485 = vmatprep.subr.mxu0 %v445
        %486 = vmatpush1.msra.mxu0 %v444
        %487 = vmatprep.subr.mxu0 %v447
        %488 = vmatpush1.msra.mxu0 %v446
        %489 = vmatprep.subr.mxu0 0.0
        %490 = vmatpush1.msra.mxu0 0.0
        %491 = vmatprep.subr.mxu0 0.0
        %492 = vmatpush1.msra.mxu0 0.0
        %493 = vmatprep.subr.mxu0 0.0
        %494 = vmatpush1.msra.mxu0 0.0
        %495 = vmatprep.subr.mxu0 0.0
        %496 = vmatpush1.msra.mxu0 0.0
        %497 = vmatprep.subr.mxu0 0.0
        %498 = vmatpush1.msra.mxu0 0.0
        %499 = vmatprep.subr.mxu0 0.0
        %500 = vmatpush1.msra.mxu0 0.0
        %501 = vmatprep.subr.mxu0 0.0
        %502 = vmatpush1.msra.mxu0 0.0
        %503 = vmatprep.subr.mxu0 0.0
        %504 = vmatpush1.msra.mxu0 0.0
        %505 = vmatprep.subr.mxu0 0.0
        %506 = vmatpush1.msra.mxu0 0.0
        %507 = vmatprep.subr.mxu0 0.0
        %508 = vmatpush1.msra.mxu0 0.0
        %509 = vmatprep.subr.mxu0 0.0
        %510 = vmatpush1.msra.mxu0 0.0
        %511 = vmatprep.subr.mxu0 0.0
        %512 = vmatpush1.msra.mxu0 0.0
        %513 = vmatprep.subr.mxu0 0.0
        %514 = vmatpush1.msra.mxu0 0.0
        %515 = vmatprep.subr.mxu0 0.0
        %516 = vmatpush1.msra.mxu0 0.0
        %517 = vmatprep.subr.mxu0 0.0
        %518 = vmatpush1.msra.mxu0 0.0
        %519 = vmatprep.subr.mxu0 0.0
        %520 = vmatpush1.msra.mxu0 0.0
        %521 = vmatprep.subr.mxu0 0.0
        %522 = vmatpush1.msra.mxu0 0.0
        %523 = vmatprep.subr.mxu0 0.0
        %524 = vmatpush1.msra.mxu0 0.0
        %525 = vmatprep.subr.mxu0 0.0
        %526 = vmatpush1.msra.mxu0 0.0
        %527 = vmatprep.subr.mxu0 0.0
        %528 = vmatpush1.msra.mxu0 0.0
        %529 = vmatprep.subr.mxu0 0.0
        %530 = vmatpush1.msra.mxu0 0.0
        %531 = vmatprep.subr.mxu0 0.0
        %532 = vmatpush1.msra.mxu0 0.0
        %533 = vmatprep.subr.mxu0 0.0
        %534 = vmatpush1.msra.mxu0 0.0
        %535 = vmatprep.subr.mxu0 0.0
        %536 = vmatpush1.msra.mxu0 0.0
        %537 = vmatprep.mubr.f32.mxu0 0.0
        %538 = vmatmul.mubr.f32.gmra.mrb[0].mxu0 %v462
        %v539 = vpop.f32.mrb[0].mxu0
        %v540 = vadd.f32 %v453, %v539
        %v541 = vpop.f32.mrb[0].mxu0
        %v542 = vadd.f32 %v457, %v541
        %543 = vmatprep.mubr.f32.mxu0 0.0
        %544 = vmatmul.mubr.f32.gmra.mrb[0].mxu0 %v465
        %v545 = vpop.f32.mrb[0].mxu0
        %v546 = vadd.f32 %v453, %v545
        %v547 = vpop.f32.mrb[0].mxu0
        %v548 = vadd.f32 %v457, %v547
        %549 = vmatprep.mubr.f32.mxu0 0.0
        %550 = vmatmul.mubr.f32.gmra.mrb[0].mxu0 %v468
        %v551 = vpop.f32.mrb[0].mxu0
        %v552 = vadd.f32 %v453, %v551
        %v553 = vpop.f32.mrb[0].mxu0
        %v554 = vadd.f32 %v457, %v553
        %555 = vmatprep.mubr.f32.mxu0 0.0
        %556 = vmatmul.mubr.f32.gmra.mrb[0].mxu0 %v471
        %v557 = vpop.f32.mrb[0].mxu0
        %v558 = vadd.f32 %v453, %v557
        %v559 = vpop.f32.mrb[0].mxu0
        %v560 = vadd.f32 %v457, %v559
        %561 = vdwg.mxu0
        %v562 = vmax.f32 %v540, 0.0
        %v563 = vmax.f32 %v542, 0.0
        %v564 = vmax.f32 %v546, 0.0
        %v565 = vmax.f32 %v548, 0.0
        %v566 = vmax.f32 %v552, 0.0
        %v567 = vmax.f32 %v554, 0.0
        %v568 = vmax.f32 %v558, 0.0
        %v569 = vmax.f32 %v560, 0.0
        %v570 = vld [vmem:[%s4] sm:$0xff]
        %v571 = vld [vmem:[%s4 + $0x8] sm:$0xff]
        %v572 = vld [vmem:[%s4 + $0x10] sm:$0xff]
        %v573 = vld [vmem:[%s4 + $0x18] sm:$0xff]
        %v574 = vld [vmem:[%s4 + $0x20] sm:$0xff]
        %v575 = vld [vmem:[%s4 + $0x28] sm:$0xff]
        %v576 = vld [vmem:[%s4 + $0x30] sm:$0xff]
        %v577 = vld [vmem:[%s4 + $0x38] sm:$0xff]
        %v578 = vld [vmem:[%s4 + $0x40] sm:$0xff]
        %v579 = vld [vmem:[%s4 + $0x48] sm:$0xff]
        %v580 = vld [vmem:[%s4 + $0x50] sm:$0xff]
        %v581 = vld [vmem:[%s4 + $0x58] sm:$0xff]
        %v582 = vld [vmem:[%s4 + $0x60] sm:$0xff]
        %v583 = vld [vmem:[%s4 + $0x68] sm:$0xff]
        %v584 = vld [vmem:[%s4 + $0x70] sm:$0xff]
        %v585 = vld [vmem:[%s4 + $0x78] sm:$0xff]
        %v586 = vld [vmem:[%s4 + $0x80] sm:$0xff]
        %v587 = vld [vmem:[%s4 + $0x88] sm:$0xff]
        %v588 = vld [vmem:[%s4 + $0x90] sm:$0xff]
        %v589 = vld [vmem:[%s4 + $0x98] sm:$0xff]
        %v590 = vld [vmem:[%s4 + $0xa0] sm:$0xff]
        %v591 = vld [vmem:[%s4 + $0xa8] sm:$0xff]
        %v592 = vld [vmem:[%s4 + $0xb0] sm:$0xff]
        %v593 = vld [vmem:[%s4 + $0xb8] sm:$0xff]
        %v594 = vld [vmem:[%s4 + $0xc0] sm:$0xff]
        %v595 = vld [vmem:[%s4 + $0xc8] sm:$0xff]
        %v596 = vld [vmem:[%s4 + $0xd0] sm:$0xff]
        %v597 = vld [vmem:[%s4 + $0xd8] sm:$0xff]
        %v598 = vld [vmem:[%s4 + $0xe0] sm:$0xff]
        %v599 = vld [vmem:[%s4 + $0xe8] sm:$0xff]
        %v600 = vld [vmem:[%s4 + $0xf0] sm:$0xff]
        %v601 = vld [vmem:[%s4 + $0xf8] sm:$0xff]
        %v602 = vld [vmem:[%s5] sm:$0x1]
        %v604 = vlaneseq
        %v605 = vshrl.u32 %v604, 7
        %v606 = vsub.s32 0, %v605
        %v607 = vrot.slane %v602, %v606
        %609 = vmatprep.subr.mxu0 0.0
        %610 = vmatpush1.msra.mxu0 %v570
        %611 = vmatprep.subr.mxu0 0.0
        %612 = vmatpush1.msra.mxu0 %v571
        %613 = vmatprep.subr.mxu0 0.0
        %614 = vmatpush1.msra.mxu0 %v572
        %615 = vmatprep.subr.mxu0 0.0
        %616 = vmatpush1.msra.mxu0 %v573
        %617 = vmatprep.subr.mxu0 0.0
        %618 = vmatpush1.msra.mxu0 %v574
        %619 = vmatprep.subr.mxu0 0.0
        %620 = vmatpush1.msra.mxu0 %v575
        %621 = vmatprep.subr.mxu0 0.0
        %622 = vmatpush1.msra.mxu0 %v576
        %623 = vmatprep.subr.mxu0 0.0
        %624 = vmatpush1.msra.mxu0 %v577
        %625 = vmatprep.subr.mxu0 0.0
        %626 = vmatpush1.msra.mxu0 %v578
        %627 = vmatprep.subr.mxu0 0.0
        %628 = vmatpush1.msra.mxu0 %v579
        %629 = vmatprep.subr.mxu0 0.0
        %630 = vmatpush1.msra.mxu0 %v580
        %631 = vmatprep.subr.mxu0 0.0
        %632 = vmatpush1.msra.mxu0 %v581
        %633 = vmatprep.subr.mxu0 0.0
        %634 = vmatpush1.msra.mxu0 %v582
        %635 = vmatprep.subr.mxu0 0.0
        %636 = vmatpush1.msra.mxu0 %v583
        %637 = vmatprep.subr.mxu0 0.0
        %638 = vmatpush1.msra.mxu0 %v584
        %639 = vmatprep.subr.mxu0 0.0
        %640 = vmatpush1.msra.mxu0 %v585
        %641 = vmatprep.subr.mxu0 0.0
        %642 = vmatpush1.msra.mxu0 %v586
        %643 = vmatprep.subr.mxu0 0.0
        %644 = vmatpush1.msra.mxu0 %v587
        %645 = vmatprep.subr.mxu0 0.0
        %646 = vmatpush1.msra.mxu0 %v588
        %647 = vmatprep.subr.mxu0 0.0
        %648 = vmatpush1.msra.mxu0 %v589
        %649 = vmatprep.subr.mxu0 0.0
        %650 = vmatpush1.msra.mxu0 %v590
        %651 = vmatprep.subr.mxu0 0.0
        %652 = vmatpush1.msra.mxu0 %v591
        %653 = vmatprep.subr.mxu0 0.0
        %654 = vmatpush1.msra.mxu0 %v592
        %655 = vmatprep.subr.mxu0 0.0
        %656 = vmatpush1.msra.mxu0 %v593
        %657 = vmatprep.subr.mxu0 0.0
        %658 = vmatpush1.msra.mxu0 %v594
        %659 = vmatprep.subr.mxu0 0.0
        %660 = vmatpush1.msra.mxu0 %v595
        %661 = vmatprep.subr.mxu0 0.0
        %662 = vmatpush1.msra.mxu0 %v596
        %663 = vmatprep.subr.mxu0 0.0
        %664 = vmatpush1.msra.mxu0 %v597
        %665 = vmatprep.subr.mxu0 0.0
        %666 = vmatpush1.msra.mxu0 %v598
        %667 = vmatprep.subr.mxu0 0.0
        %668 = vmatpush1.msra.mxu0 %v599
        %669 = vmatprep.subr.mxu0 0.0
        %670 = vmatpush1.msra.mxu0 %v600
        %671 = vmatprep.subr.mxu0 0.0
        %672 = vmatpush1.msra.mxu0 %v601
        %673 = vmatprep.mubr.f32.mxu0 %v563
        %674 = vmatmul.mubr.f32.gmra.mrb[0].mxu0 %v562
        %v675 = vpop.f32.mrb[0].mxu0
        %v676 = vadd.f32 %v607, %v675
        %v677 = vpop.f32.mrb[0].mxu0
        %678 = vmatprep.mubr.f32.mxu0 %v565
        %679 = vmatmul.mubr.f32.gmra.mrb[0].mxu0 %v564
        %v680 = vpop.f32.mrb[0].mxu0
        %v681 = vadd.f32 %v607, %v680
        %v682 = vpop.f32.mrb[0].mxu0
        %683 = vmatprep.mubr.f32.mxu0 %v567
        %684 = vmatmul.mubr.f32.gmra.mrb[0].mxu0 %v566
        %v685 = vpop.f32.mrb[0].mxu0
        %v686 = vadd.f32 %v607, %v685
        %v687 = vpop.f32.mrb[0].mxu0
        %688 = vmatprep.mubr.f32.mxu0 %v569
        %689 = vmatmul.mubr.f32.gmra.mrb[0].mxu0 %v568
        %v690 = vpop.f32.mrb[0].mxu0
        %v691 = vadd.f32 %v607, %v690
        %v692 = vpop.f32.mrb[0].mxu0
        %693 = vdwg.mxu0
        %v694 = vmul.f32 %v676, 0.5
        %v695 = vmul.f32 %v681, 0.5
        %v696 = vmul.f32 %v686, 0.5
        %v697 = vmul.f32 %v691, 0.5
        %v698 = vmul.f32 %v694, 1.442695
        %v699 = vpow.pop %v698
        %v700 = vmul.f32 %v695, 1.442695
        %v701 = vpow.pop %v700
        %v702 = vmul.f32 %v696, 1.442695
        %v703 = vpow.pop %v702
        %v704 = vmul.f32 %v697, 1.442695
        %v705 = vpow.pop %v704
        %710 = vrot.lane.b32.xlu0 %v699, 112
        %v711 = vpop.permute.xlu0 %710
        %712 = vrot.lane.b32.xlu0 %v701, 112
        %v713 = vpop.permute.xlu0 %712
        %714 = vrot.lane.b32.xlu0 %v703, 112
        %v715 = vpop.permute.xlu0 %714
        %716 = vrot.lane.b32.xlu0 %v705, 112
        %v717 = vpop.permute.xlu0 %716
        %v722 = vmul.f32 %v428, %v711
        %v723 = vmul.f32 %v429, %v713
        %v724 = vmul.f32 %v430, %v715
        %v725 = vmul.f32 %v431, %v717
        %v726 = vadd.f32 %v676, %v722
        %v727 = vadd.f32 %v681, %v723
        %v728 = vadd.f32 %v686, %v724
        %v729 = vadd.f32 %v691, %v725
        %v730 = vld [vmem:[%s6] sm:$0xff]
        %v731 = vld [vmem:[%s6 + $0x8] sm:$0xff]
        %v732 = vld [vmem:[%s6 + $0x10] sm:$0xff]
        %v733 = vld [vmem:[%s6 + $0x18] sm:$0xff]
        %v734 = vld [vmem:[%s7] sm:$0x3]
        %v736 = vlaneseq
        %v737 = vshrl.u32 %v736, 7
        %v738 = vsub.s32 0, %v737
        %v739 = vrot.slane %v734, %v738
        %v740 = vlaneseq
        %v741 = vshrl.u32 %v740, 7
        %v742 = vsub.s32 1, %v741
        %v743 = vrot.slane %v734, %v742
        %vm746 = vcmask 130048
        %v748 = vsel %vm746, %v726, 0
        %v751 = vsel %vm746, %v727, 0
        %v754 = vsel %vm746, %v728, 0
        %v757 = vsel %vm746, %v729, 0
        %759 = vmatprep.subr.mxu0 %v731
        %760 = vmatpush1.msra.mxu0 %v730
        %761 = vmatprep.subr.mxu0 %v733
        %762 = vmatpush1.msra.mxu0 %v732
        %763 = vmatprep.subr.mxu0 0.0
        %764 = vmatpush1.msra.mxu0 0.0
        %765 = vmatprep.subr.mxu0 0.0
        %766 = vmatpush1.msra.mxu0 0.0
        %767 = vmatprep.subr.mxu0 0.0
        %768 = vmatpush1.msra.mxu0 0.0
        %769 = vmatprep.subr.mxu0 0.0
        %770 = vmatpush1.msra.mxu0 0.0
        %771 = vmatprep.subr.mxu0 0.0
        %772 = vmatpush1.msra.mxu0 0.0
        %773 = vmatprep.subr.mxu0 0.0
        %774 = vmatpush1.msra.mxu0 0.0
        %775 = vmatprep.subr.mxu0 0.0
        %776 = vmatpush1.msra.mxu0 0.0
        %777 = vmatprep.subr.mxu0 0.0
        %778 = vmatpush1.msra.mxu0 0.0
        %779 = vmatprep.subr.mxu0 0.0
        %780 = vmatpush1.msra.mxu0 0.0
        %781 = vmatprep.subr.mxu0 0.0
        %782 = vmatpush1.msra.mxu0 0.0
        %783 = vmatprep.subr.mxu0 0.0
        %784 = vmatpush1.msra.mxu0 0.0
        %785 = vmatprep.subr.mxu0 0.0
        %786 = vmatpush1.msra.mxu0 0.0
        %787 = vmatprep.subr.mxu0 0.0
        %788 = vmatpush1.msra.mxu0 0.0
        %789 = vmatprep.subr.mxu0 0.0
        %790 = vmatpush1.msra.mxu0 0.0
        %791 = vmatprep.subr.mxu0 0.0
        %792 = vmatpush1.msra.mxu0 0.0
        %793 = vmatprep.subr.mxu0 0.0
        %794 = vmatpush1.msra.mxu0 0.0
        %795 = vmatprep.subr.mxu0 0.0
        %796 = vmatpush1.msra.mxu0 0.0
        %797 = vmatprep.subr.mxu0 0.0
        %798 = vmatpush1.msra.mxu0 0.0
        %799 = vmatprep.subr.mxu0 0.0
        %800 = vmatpush1.msra.mxu0 0.0
        %801 = vmatprep.subr.mxu0 0.0
        %802 = vmatpush1.msra.mxu0 0.0
        %803 = vmatprep.subr.mxu0 0.0
        %804 = vmatpush1.msra.mxu0 0.0
        %805 = vmatprep.subr.mxu0 0.0
        %806 = vmatpush1.msra.mxu0 0.0
        %807 = vmatprep.subr.mxu0 0.0
        %808 = vmatpush1.msra.mxu0 0.0
        %809 = vmatprep.subr.mxu0 0.0
        %810 = vmatpush1.msra.mxu0 0.0
        %811 = vmatprep.subr.mxu0 0.0
        %812 = vmatpush1.msra.mxu0 0.0
        %813 = vmatprep.subr.mxu0 0.0
        %814 = vmatpush1.msra.mxu0 0.0
        %815 = vmatprep.subr.mxu0 0.0
        %816 = vmatpush1.msra.mxu0 0.0
        %817 = vmatprep.subr.mxu0 0.0
        %818 = vmatpush1.msra.mxu0 0.0
        %819 = vmatprep.subr.mxu0 0.0
        %820 = vmatpush1.msra.mxu0 0.0
        %821 = vmatprep.subr.mxu0 0.0
        %822 = vmatpush1.msra.mxu0 0.0
        %823 = vmatprep.mubr.f32.mxu0 0.0
        %824 = vmatmul.mubr.f32.gmra.mrb[0].mxu0 %v748
        %v825 = vpop.f32.mrb[0].mxu0
        %v826 = vadd.f32 %v739, %v825
        %v827 = vpop.f32.mrb[0].mxu0
        %v828 = vadd.f32 %v743, %v827
        %829 = vmatprep.mubr.f32.mxu0 0.0
        %830 = vmatmul.mubr.f32.gmra.mrb[0].mxu0 %v751
        %v831 = vpop.f32.mrb[0].mxu0
        %v832 = vadd.f32 %v739, %v831
        %v833 = vpop.f32.mrb[0].mxu0
        %v834 = vadd.f32 %v743, %v833
        %835 = vmatprep.mubr.f32.mxu0 0.0
        %836 = vmatmul.mubr.f32.gmra.mrb[0].mxu0 %v754
        %v837 = vpop.f32.mrb[0].mxu0
        %v838 = vadd.f32 %v739, %v837
        %v839 = vpop.f32.mrb[0].mxu0
        %v840 = vadd.f32 %v743, %v839
        %841 = vmatprep.mubr.f32.mxu0 0.0
        %842 = vmatmul.mubr.f32.gmra.mrb[0].mxu0 %v757
        %v843 = vpop.f32.mrb[0].mxu0
        %v844 = vadd.f32 %v739, %v843
        %v845 = vpop.f32.mrb[0].mxu0
        %v846 = vadd.f32 %v743, %v845
        %847 = vdwg.mxu0
        %v848 = vmax.f32 %v826, 0.0
        %v849 = vmax.f32 %v828, 0.0
        %v850 = vmax.f32 %v832, 0.0
        %v851 = vmax.f32 %v834, 0.0
        %v852 = vmax.f32 %v838, 0.0
        %v853 = vmax.f32 %v840, 0.0
        %v854 = vmax.f32 %v844, 0.0
        %v855 = vmax.f32 %v846, 0.0
        %v856 = vld [vmem:[%s8] sm:$0xff]
        %v857 = vld [vmem:[%s8 + $0x8] sm:$0xff]
        %v858 = vld [vmem:[%s8 + $0x10] sm:$0xff]
        %v859 = vld [vmem:[%s8 + $0x18] sm:$0xff]
        %v860 = vld [vmem:[%s8 + $0x20] sm:$0xff]
        %v861 = vld [vmem:[%s8 + $0x28] sm:$0xff]
        %v862 = vld [vmem:[%s8 + $0x30] sm:$0xff]
        %v863 = vld [vmem:[%s8 + $0x38] sm:$0xff]
        %v864 = vld [vmem:[%s8 + $0x40] sm:$0xff]
        %v865 = vld [vmem:[%s8 + $0x48] sm:$0xff]
        %v866 = vld [vmem:[%s8 + $0x50] sm:$0xff]
        %v867 = vld [vmem:[%s8 + $0x58] sm:$0xff]
        %v868 = vld [vmem:[%s8 + $0x60] sm:$0xff]
        %v869 = vld [vmem:[%s8 + $0x68] sm:$0xff]
        %v870 = vld [vmem:[%s8 + $0x70] sm:$0xff]
        %v871 = vld [vmem:[%s8 + $0x78] sm:$0xff]
        %v872 = vld [vmem:[%s8 + $0x80] sm:$0xff]
        %v873 = vld [vmem:[%s8 + $0x88] sm:$0xff]
        %v874 = vld [vmem:[%s8 + $0x90] sm:$0xff]
        %v875 = vld [vmem:[%s8 + $0x98] sm:$0xff]
        %v876 = vld [vmem:[%s8 + $0xa0] sm:$0xff]
        %v877 = vld [vmem:[%s8 + $0xa8] sm:$0xff]
        %v878 = vld [vmem:[%s8 + $0xb0] sm:$0xff]
        %v879 = vld [vmem:[%s8 + $0xb8] sm:$0xff]
        %v880 = vld [vmem:[%s8 + $0xc0] sm:$0xff]
        %v881 = vld [vmem:[%s8 + $0xc8] sm:$0xff]
        %v882 = vld [vmem:[%s8 + $0xd0] sm:$0xff]
        %v883 = vld [vmem:[%s8 + $0xd8] sm:$0xff]
        %v884 = vld [vmem:[%s8 + $0xe0] sm:$0xff]
        %v885 = vld [vmem:[%s8 + $0xe8] sm:$0xff]
        %v886 = vld [vmem:[%s8 + $0xf0] sm:$0xff]
        %v887 = vld [vmem:[%s8 + $0xf8] sm:$0xff]
        %v888 = vld [vmem:[%s9] sm:$0x1]
        %v890 = vlaneseq
        %v891 = vshrl.u32 %v890, 7
        %v892 = vsub.s32 0, %v891
        %v893 = vrot.slane %v888, %v892
        %895 = vmatprep.subr.mxu0 0.0
        %896 = vmatpush1.msra.mxu0 %v856
        %897 = vmatprep.subr.mxu0 0.0
        %898 = vmatpush1.msra.mxu0 %v857
        %899 = vmatprep.subr.mxu0 0.0
        %900 = vmatpush1.msra.mxu0 %v858
        %901 = vmatprep.subr.mxu0 0.0
        %902 = vmatpush1.msra.mxu0 %v859
        %903 = vmatprep.subr.mxu0 0.0
        %904 = vmatpush1.msra.mxu0 %v860
        %905 = vmatprep.subr.mxu0 0.0
        %906 = vmatpush1.msra.mxu0 %v861
        %907 = vmatprep.subr.mxu0 0.0
        %908 = vmatpush1.msra.mxu0 %v862
        %909 = vmatprep.subr.mxu0 0.0
        %910 = vmatpush1.msra.mxu0 %v863
        %911 = vmatprep.subr.mxu0 0.0
        %912 = vmatpush1.msra.mxu0 %v864
        %913 = vmatprep.subr.mxu0 0.0
        %914 = vmatpush1.msra.mxu0 %v865
        %915 = vmatprep.subr.mxu0 0.0
        %916 = vmatpush1.msra.mxu0 %v866
        %917 = vmatprep.subr.mxu0 0.0
        %918 = vmatpush1.msra.mxu0 %v867
        %919 = vmatprep.subr.mxu0 0.0
        %920 = vmatpush1.msra.mxu0 %v868
        %921 = vmatprep.subr.mxu0 0.0
        %922 = vmatpush1.msra.mxu0 %v869
        %923 = vmatprep.subr.mxu0 0.0
        %924 = vmatpush1.msra.mxu0 %v870
        %925 = vmatprep.subr.mxu0 0.0
        %926 = vmatpush1.msra.mxu0 %v871
        %927 = vmatprep.subr.mxu0 0.0
        %928 = vmatpush1.msra.mxu0 %v872
        %929 = vmatprep.subr.mxu0 0.0
        %930 = vmatpush1.msra.mxu0 %v873
        %931 = vmatprep.subr.mxu0 0.0
        %932 = vmatpush1.msra.mxu0 %v874
        %933 = vmatprep.subr.mxu0 0.0
        %934 = vmatpush1.msra.mxu0 %v875
        %935 = vmatprep.subr.mxu0 0.0
        %936 = vmatpush1.msra.mxu0 %v876
        %937 = vmatprep.subr.mxu0 0.0
        %938 = vmatpush1.msra.mxu0 %v877
        %939 = vmatprep.subr.mxu0 0.0
        %940 = vmatpush1.msra.mxu0 %v878
        %941 = vmatprep.subr.mxu0 0.0
        %942 = vmatpush1.msra.mxu0 %v879
        %943 = vmatprep.subr.mxu0 0.0
        %944 = vmatpush1.msra.mxu0 %v880
        %945 = vmatprep.subr.mxu0 0.0
        %946 = vmatpush1.msra.mxu0 %v881
        %947 = vmatprep.subr.mxu0 0.0
        %948 = vmatpush1.msra.mxu0 %v882
        %949 = vmatprep.subr.mxu0 0.0
        %950 = vmatpush1.msra.mxu0 %v883
        %951 = vmatprep.subr.mxu0 0.0
        %952 = vmatpush1.msra.mxu0 %v884
        %953 = vmatprep.subr.mxu0 0.0
        %954 = vmatpush1.msra.mxu0 %v885
        %955 = vmatprep.subr.mxu0 0.0
        %956 = vmatpush1.msra.mxu0 %v886
        %957 = vmatprep.subr.mxu0 0.0
        %958 = vmatpush1.msra.mxu0 %v887
        %959 = vmatprep.mubr.f32.mxu0 %v849
        %960 = vmatmul.mubr.f32.gmra.mrb[0].mxu0 %v848
        %v961 = vpop.f32.mrb[0].mxu0
        %v962 = vadd.f32 %v893, %v961
        %v963 = vpop.f32.mrb[0].mxu0
        %964 = vmatprep.mubr.f32.mxu0 %v851
        %965 = vmatmul.mubr.f32.gmra.mrb[0].mxu0 %v850
        %v966 = vpop.f32.mrb[0].mxu0
        %v967 = vadd.f32 %v893, %v966
        %v968 = vpop.f32.mrb[0].mxu0
        %969 = vmatprep.mubr.f32.mxu0 %v853
        %970 = vmatmul.mubr.f32.gmra.mrb[0].mxu0 %v852
        %v971 = vpop.f32.mrb[0].mxu0
        %v972 = vadd.f32 %v893, %v971
        %v973 = vpop.f32.mrb[0].mxu0
        %974 = vmatprep.mubr.f32.mxu0 %v855
        %975 = vmatmul.mubr.f32.gmra.mrb[0].mxu0 %v854
        %v976 = vpop.f32.mrb[0].mxu0
        %v977 = vadd.f32 %v893, %v976
        %v978 = vpop.f32.mrb[0].mxu0
        %979 = vdwg.mxu0
        %v980 = vmul.f32 %v962, 0.5
        %v981 = vmul.f32 %v967, 0.5
        %v982 = vmul.f32 %v972, 0.5
        %v983 = vmul.f32 %v977, 0.5
        %v984 = vtanh.pop %v980
        %v985 = vtanh.pop %v981
        %v986 = vtanh.pop %v982
        %v987 = vtanh.pop %v983
        %v988 = vadd.f32 %v984, 1.0
        %v989 = vadd.f32 %v985, 1.0
        %v990 = vadd.f32 %v986, 1.0
        %v991 = vadd.f32 %v987, 1.0
        %v992 = vmul.f32 %v988, 0.5
        %v993 = vmul.f32 %v989, 0.5
        %v994 = vmul.f32 %v990, 0.5
        %v995 = vmul.f32 %v991, 0.5
        %996 = vst.msk [vmem:[%s397] sm:$0xff] %vm460, %v992
        %997 = vst.msk [vmem:[%s397 + $0x8] sm:$0xff] %vm460, %v993
        %998 = vst.msk [vmem:[%s397 + $0x10] sm:$0xff] %vm460, %v994
        %999 = vst.msk [vmem:[%s397 + $0x18] sm:$0xff] %vm460, %v995
        %vm1000 = vcmask 261120
        %1001 = vst.msk [vmem:[%s422] sm:$0xff] %vm1000, %v676
        %1002 = vst.msk [vmem:[%s422 + $0x8] sm:$0xff] %vm1000, %v681
        %1003 = vst.msk [vmem:[%s422 + $0x10] sm:$0xff] %vm1000, %v686
        %1004 = vst.msk [vmem:[%s422 + $0x18] sm:$0xff] %vm1000, %v691
        %s1005 = sand.u32 %s254, 1
        %s1006 = scalar_lea.sflag [#allocation3], %s1005
        %s1007 = sand.u32 %s254, 1
        %s1008 = smul.addr %s1007, 32
        %s1009 = scalar_lea.vmem [#allocation2], %s1008
        %s1010 = smul.u32 4, %s26
        %p1011 = scmp.lt.s32.totalorder %s1010, 7
        %s1012 = scalar_select %p1011, %s1010, 7
        %s1013 = smul.addr %s1012, 8
        %s1014 = scalar_lea.vmem %s11, %s1013
        // Predicated region
        $region61: #{tpu_custom_call.1} parent=59 // pred_check
          %p1015 = pneg %p264
        $region62: #{tpu_custom_call.1} parent=59 // pred_check_branch
          %1017 = sbr.rel (%p1015) target = $region64
        $region63: #{tpu_custom_call.1} parent=59 // pred_region
          %s1018 = smul.u32 4, %s26
          %s1020 = ssub.s32 512, 512
          %1021 = vsyncadd %s1006, %s1020
          %s1022 = smul.addr %s1018, 128
          %s1023 = scalar_lea.hbm %s10, %s1022
          %s1024 = sshll.u32 %s1009, 4
          %s1025 = int_to_ptr.vmem [resolvable:$true] %s1024
          %1030 = dma.vmem_to_hbm [thread:$0]  %s1025, 512, %s1023, %s1006, 128, 128, 8
        $region64: #{tpu_custom_call.1} parent=59 // pred_fallthru
          _
        // Predicated region
        $region65: #{tpu_custom_call.1} parent=59 // pred_check
          %p1031 = pneg %p290
        $region66: #{tpu_custom_call.1} parent=59 // pred_check_branch
          %1033 = sbr.rel (%p1031) target = $region68
        $region67: #{tpu_custom_call.1} parent=59 // pred_region
          %s1034 = smul.u32 4, %s26
        $region68: #{tpu_custom_call.1} parent=59 // pred_fallthru
          _
      $region60: #{tpu_custom_call.1} parent=5 // pred_fallthru
        _
      %p1035 = scmp.le.s32.totalorder 2, %s21
      // Predicated region
      $region69: #{tpu_custom_call.1} parent=5 // pred_check
        %p1036 = pneg %p1035
      $region70: #{tpu_custom_call.1} parent=5 // pred_check_branch
        %1038 = sbr.rel (%p1036) target = $region72
      $region71: #{tpu_custom_call.1} parent=5 // pred_region
        %s1039 = ssub.s32 %s21, 2
        // Predicated region
        $region73: #{tpu_custom_call.1} parent=71 // pred_check
          %p1040 = pneg %p270
        $region74: #{tpu_custom_call.1} parent=71 // pred_check_branch
          %1042 = sbr.rel (%p1040) target = $region76
        $region75: #{tpu_custom_call.1} parent=71 // pred_region
          %s1043 = sand.u32 %s255, 1
          %s1044 = scalar_lea.sflag [#allocation3], %s1043
          %s1045 = sand.u32 %s255, 1
          %s1046 = smul.addr %s1045, 32
          %s1047 = scalar_lea.vmem [#allocation2], %s1046
          %1048 = dma.done %s1044, 512
        $region76: #{tpu_custom_call.1} parent=71 // pred_fallthru
          _
        // Predicated region
        $region77: #{tpu_custom_call.1} parent=71 // pred_check
          %p1049 = pneg %p296
        $region78: #{tpu_custom_call.1} parent=71 // pred_check_branch
          %1051 = sbr.rel (%p1049) target = $region80
        $region79: #{tpu_custom_call.1} parent=71 // pred_region
          %s1052 = smul.u32 4, %s27
          %p1053 = scmp.lt.s32.totalorder %s1052, 7
          %s1054 = scalar_select %p1053, %s1052, 7
          %s1055 = smul.addr %s1054, 8
          %s1056 = scalar_lea.vmem %s11, %s1055
        $region80: #{tpu_custom_call.1} parent=71 // pred_fallthru
          _
      $region72: #{tpu_custom_call.1} parent=5 // pred_fallthru
        _
    $region6: #{tpu_custom_call.1} parent=1 // loop_footer
      %s25 = sadd.s32 1, %s21
    $region7: #{tpu_custom_call.1} parent=1 // loop_footer_branch
      %20 = sbr.rel target = $region3
    $region8: #{tpu_custom_call.1} parent=1 // loop_exit
      _
    %1057 = vsyncpa [#allocation3], 1
    %s1058 = scalar_lea.sflag [#allocation3], 1
    %1059 = vsyncpa %s1058, 1

</llo_original>
